<compile_context>
chip_gen: v6e
topology: v6e:2x2x1
jax: 0.10.0
libtpu: 0.0.40
codegen_flags: <defaults>
</compile_context>

<pallas_src>
import jax
import jax.numpy as jnp
from jax.experimental import pallas as pl
from jax.experimental.pallas import tpu as pltpu


def _copy_kernel(x_ref, o_ref):
    # Entire forward pass of VGG_Classifier: o = x.
    o_ref[...] = x_ref[...]


def vgg_classifier_forward(x):
    """Forward pass of VGG_Classifier: returns x unchanged (identity)."""
    orig_shape = x.shape
    total = x.size
    itemsize = jnp.dtype(x.dtype).itemsize

    # Degenerate / unaligned sizes: forward() is literally identity, so skip the
    # device copy entirely rather than forcing masked partial-vreg loads/stores.
    if total == 0 or total % (8 * 128) != 0:
        return x

    # Lane-dense slab: widest lane extent C (multiple of 128, <= 4096) such that
    # the row count R = total // C is still a multiple of 8 (full sublanes),
    # so every block is (8,128)-aligned and stores are unmasked full `vst`s.
    C = 128
    for cand in (4096, 2048, 1024, 512, 256, 128):
        if total % (8 * cand) == 0:
            C = cand
            break
    R = total // C

    # ~2 MiB per block buffer -> with double-buffered input + output ~8 MiB of
    # VMEM, comfortably under the default scoped limit on v5e/v6e and v7x
    # (64 MiB physical / 32 MiB default scoped).
    rows_target = max(8, (2 * 1024 * 1024) // (C * itemsize))
    rows_target = (rows_target // 8) * 8
    tb = min(R, rows_target)
    grid = (pl.cdiv(R, tb),)

    x2 = x.reshape(R, C)
    out = pl.pallas_call(
        _copy_kernel,
        out_shape=jax.ShapeDtypeStruct((R, C), x.dtype),
        grid_spec=pl.GridSpec(
            grid=grid,
            in_specs=[pl.BlockSpec((tb, C), lambda i: (i, 0))],
            out_specs=pl.BlockSpec((tb, C), lambda i: (i, 0)),
        ),
        input_output_aliases={0: 0},  # let the output reuse the input HBM buffer
        compiler_params=pltpu.CompilerParams(
            dimension_semantics=("parallel",),  # shard rows across TCs on v7x
        ),
        cost_estimate=pl.CostEstimate(
            flops=0,
            transcendentals=0,
            bytes_accessed=2 * total * itemsize,
        ),
    )(x2)
    return out.reshape(orig_shape)


# TODO(synk): the reference __init__ builds fc1 (4096, in_feature),
# fc2 (4096, 4096), fc3 (num_classes, 4096) + ReLUs, but forward() never
# applies them, so no parameters are constructed or consumed here.  If the FC
# stack is ever meant to run, it should be a separate MXU-tiled matmul+ReLU
# kernel (K-tiled for fc2 on v7x), not an extension of this copy kernel.


if __name__ == "__main__":
    key = jax.random.PRNGKey(0)
    num_classes = 10   # unused by forward(), kept only for spec parity
    image_size = 32    # -> in_feature = 512
    in_feature = 512 if image_size == 32 else 25088

    x_key, x_odd_key = jax.random.split(key)

    # Small deterministic input: batch=2, features=in_feature (512).
    x = jax.random.normal(x_key, (2, in_feature), dtype=jnp.float32)
    y = jax.block_until_ready(vgg_classifier_forward(x))
    assert y.shape == x.shape and y.dtype == x.dtype
    assert bool(jnp.all(y == x))

    # Unaligned-shape fallback path (pure identity, no kernel launch).
    x_odd = jax.random.normal(x_odd_key, (3, 7), dtype=jnp.float32)
    y_odd = jax.block_until_ready(vgg_classifier_forward(x_odd))
    assert y_odd.shape == x_odd.shape and bool(jnp.all(y_odd == x_odd))

    print("KERNEL_OK")
</pallas_src>

<mosaic_0001>
module attributes {stable_mosaic.version = 11 : i64} {
  func.func @_copy_kernel(%arg0: i32, %arg1: memref<8x128xf32, #tpu.memory_space<vmem>>, %arg2: memref<8x128xf32, #tpu.memory_space<vmem>>) attributes {dimension_semantics = [#tpu.dimension_semantics<parallel>], iteration_bounds = array<i64: 1>, scalar_prefetch = 0 : i64, scratch_operands = 0 : i64, tpu.core_type = #tpu.core_type<tc>, window_params = [{transform_indices = @transform_0, window_bounds = array<i64: 8, 128>}, {transform_indices = @transform_1, window_bounds = array<i64: 8, 128>}]} {
    %c0 = arith.constant 0 : index
    %c0_0 = arith.constant 0 : index
    %0 = vector.load %arg1[%c0, %c0_0] : memref<8x128xf32, #tpu.memory_space<vmem>>, vector<8x128xf32>
    %c0_1 = arith.constant 0 : index
    %c0_2 = arith.constant 0 : index
    %1 = vector.load %arg2[%c0_1, %c0_2] : memref<8x128xf32, #tpu.memory_space<vmem>>, vector<8x128xf32>
    tpu.vector_store %arg2[%c0_1, %c0_2], %0 {strides = array<i32>} : memref<8x128xf32, #tpu.memory_space<vmem>>, vector<8x128xf32>,
    return
  }
  func.func @transform_0(%arg0: i32) -> (i32, i32) {
    %c0_i32 = arith.constant 0 : i32
    %c0_i32_0 = arith.constant 0 : i32
    return %arg0, %c0_i32 : i32, i32
  }
  func.func @transform_1(%arg0: i32) -> (i32, i32) {
    %c0_i32 = arith.constant 0 : i32
    %c0_i32_0 = arith.constant 0 : i32
    return %arg0, %c0_i32 : i32, i32
  }
}

</mosaic_0001>

<llo_original>
// kernel: tpu_custom_call.1
$region0: #{tpu_custom_call.1}
  #allocation0 [shape = 'u32[]', space=smem, size = 0x4, offset = 0x4, fixed_abs, tag = 'smem constant byte address 0x4 - core index']
  #allocation1 [shape = 'u32[144,128]{1,0:T(1,128)}', space=vmem, size = 0x12000, scoped, tag = 'internal scratch']
  %s0 = inlined_call_operand.hbm [shape: f32[8,128], index: 0, kind: input, shape index: {}, may-alias: {0,1}]
  %s1 = inlined_call_operand.hbm [shape: f32[8,128], index: 1, kind: output, shape index: {}, may-alias: {0,1}]
  %s2 = sld [smem:[#allocation0]]
  $region18: #{tpu_custom_call.1} parent=0
    _
  %s4 = ssub.s32 1, %s2
  %s5 = scalar_select 0, %s4, %s2
  $region1: #{tpu_custom_call.1} parent=0
    #allocation2 [shape = 'u8[4096]{0}', space=vmem, size = 0x1000, scoped, tag = 'input window, operand 0, single buffered']
    #allocation3 [shape = 's32[1]{0}', space=sflag, size = 0x4, scoped, tag = 'scoped memory for tpu_custom_call.1']
    #allocation4 [shape = 's32[1]{0}', space=sflag, size = 0x4, scoped, tag = 'scoped memory for tpu_custom_call.1']
    #allocation5 [shape = 'u8[4096]{0}', space=vmem, size = 0x1000, scoped, tag = 'output window, operand 0, single buffered']
    %6 = vsyncpa [#allocation3], 0
    %7 = vsyncpa [#allocation4], 0
    // Predicated region
    $region2: #{tpu_custom_call.1} parent=1 // pred_check
      _
    $region3: #{tpu_custom_call.1} parent=1 // pred_check_branch
      %9 = sbr.rel (0) target = $region5
    $region4: #{tpu_custom_call.1} parent=1 // pred_region
      %s11 = ssub.s32 128, 128
      %12 = vsyncadd [#allocation3], %s11
      %s14 = sshll.u32 [#allocation2], 4
      %s15 = int_to_ptr.vmem [resolvable:$true] %s14
      %17 = dma.hbm_to_vmem [thread:$0]  %s0, 128, %s15, [#allocation3]
    $region5: #{tpu_custom_call.1} parent=1 // pred_fallthru
      _
    // Predicated region
    $region6: #{tpu_custom_call.1} parent=1 // pred_check
      _
    $region7: #{tpu_custom_call.1} parent=1 // pred_check_branch
      %19 = sbr.rel (0) target = $region9
    $region8: #{tpu_custom_call.1} parent=1 // pred_region
      %20 = dma.done [#allocation3], 128
    $region9: #{tpu_custom_call.1} parent=1 // pred_fallthru
      _
    %v21 = vld [vmem:[#allocation2] sm:$0xff]
    %22 = vst [vmem:[#allocation5] sm:$0xff] %v21
    // Predicated region
    $region10: #{tpu_custom_call.1} parent=1 // pred_check
      _
    $region11: #{tpu_custom_call.1} parent=1 // pred_check_branch
      %24 = sbr.rel (0) target = $region13
    $region12: #{tpu_custom_call.1} parent=1 // pred_region
      %s26 = ssub.s32 128, 128
      %27 = vsyncadd [#allocation4], %s26
      %s29 = sshll.u32 [#allocation5], 4
      %s30 = int_to_ptr.vmem [resolvable:$true] %s29
      %32 = dma.vmem_to_hbm [thread:$0]  %s30, 128, %s1, [#allocation4]
    $region13: #{tpu_custom_call.1} parent=1 // pred_fallthru
      _
    // Predicated region
    $region14: #{tpu_custom_call.1} parent=1 // pred_check
      _
    $region15: #{tpu_custom_call.1} parent=1 // pred_check_branch
      %34 = sbr.rel (0) target = $region17
    $region16: #{tpu_custom_call.1} parent=1 // pred_region
      %35 = dma.done [#allocation4], 128
    $region17: #{tpu_custom_call.1} parent=1 // pred_fallthru
      _
    %36 = vsyncpa [#allocation3], 1
    %37 = vsyncpa [#allocation4], 1

</llo_original>
